<compile_context>
chip_gen: v6e
topology: v6e:2x2x1
jax: 0.10.0
libtpu: 0.0.40
codegen_flags: <defaults>
</compile_context>

<pallas_src>
import functools

import jax
import jax.numpy as jnp
from jax.experimental import pallas as pl
from jax.experimental.pallas import tpu as pltpu

PADDING_IDX = 0


def _gather_kernel(ids_ref, emb_row_ref, out_ref):
    # BlockSpec already fetched the (1, 1, E) embedding row for token (b, s) and the
    # output block is placed at (s, b, 0, 0): the kernel body is a pure copy.
    del ids_ref
    out_ref[0] = emb_row_ref[...]


def _mask_kernel(x_ref, mask_ref, *, padding_idx):
    mask_ref[...] = (x_ref[...] != padding_idx).astype(mask_ref.dtype)


def glove_embedding_forward(x, embedding_table, padding_idx=PADDING_IDX):
    """x: (batch, seq_len) int32 token ids; embedding_table: (vocab, emb) float.

    Returns (out_emb (seq_len, batch, emb), mask (batch, seq_len) float32),
    matching GloveEmbedding.forward.
    """
    B, S = x.shape
    V, E = embedding_table.shape

    # (V, 1, E): gathered block (1, 1, E) keeps the last two dims equal to the full
    # array dims; E (lane axis) stays lane-dense.
    emb3 = embedding_table.reshape(V, 1, E)

    bytes_accessed = 2 * B * S * E * embedding_table.dtype.itemsize + 2 * B * S * 4

    out4 = pl.pallas_call(
        _gather_kernel,
        out_shape=jax.ShapeDtypeStruct((S, B, 1, E), embedding_table.dtype),
        grid_spec=pltpu.PrefetchScalarGridSpec(
            num_scalar_prefetch=1,        # token ids land in SMEM for the index_maps
            grid=(S, B),
            in_specs=[
                # Data-dependent row gather: block row index = ids[b, s].
                pl.BlockSpec((1, 1, E), lambda s, b, ids: (ids[b, s], 0, 0)),
            ],
            # Scatter the row directly into its transposed (seq, batch) slot.
            out_specs=pl.BlockSpec((1, 1, 1, E), lambda s, b, ids: (s, b, 0, 0)),
        ),
        compiler_params=pltpu.CompilerParams(
            # Every (s, b) grid point touches a disjoint output block -> the seq axis
            # can be sharded across TensorCores (v7x megacore).
            dimension_semantics=("parallel", "arbitrary")),
        cost_estimate=pl.CostEstimate(
            flops=0, transcendentals=0, bytes_accessed=int(bytes_accessed)),
    )(x, emb3)
    out_emb = out4.reshape(S, B, E)

    # Tiny single-invocation kernel for the padding mask (whole arrays as blocks).
    mask = pl.pallas_call(
        functools.partial(_mask_kernel, padding_idx=padding_idx),
        out_shape=jax.ShapeDtypeStruct((B, S), jnp.float32),
    )(x)

    return out_emb, mask


def glove_embedding_reference(x, embedding_table, padding_idx=PADDING_IDX):
    """Pure-JAX reference matching the PyTorch forward."""
    out_emb = jnp.transpose(embedding_table[x], (1, 0, 2))
    mask = (x != padding_idx).astype(jnp.float32)
    return out_emb, mask


if __name__ == "__main__":
    batch = 2
    seq_len = 8
    vocab_size = 32
    embedding_size = 128   # lane-dense last dim (multiple of 128)

    key = jax.random.PRNGKey(0)
    k_emb, k_ids = jax.random.split(key)

    embedding_table = jax.random.normal(
        k_emb, (vocab_size, embedding_size), dtype=jnp.float32)
    x = jax.random.randint(k_ids, (batch, seq_len), 1, vocab_size, dtype=jnp.int32)
    # Simulate right-padding so the mask path is exercised.
    x = x.at[0, -2:].set(PADDING_IDX)
    x = x.at[1, -3:].set(PADDING_IDX)

    out_emb, mask = glove_embedding_forward(x, embedding_table)
    out_emb, mask = jax.block_until_ready((out_emb, mask))

    ref_emb, ref_mask = glove_embedding_reference(x, embedding_table)
    assert out_emb.shape == (seq_len, batch, embedding_size), out_emb.shape
    assert mask.shape == (batch, seq_len), mask.shape
    assert jnp.allclose(out_emb, ref_emb), (
        f"max abs err = {jnp.max(jnp.abs(out_emb - ref_emb))}")
    assert jnp.array_equal(mask, ref_mask), "mask mismatch"

    print("KERNEL_OK")
</pallas_src>

<mosaic_0001>
module attributes {stable_mosaic.version = 11 : i64} {
  func.func @_gather_kernel(%arg0: i32, %arg1: i32, %arg2: memref<2x8xi32, #tpu.memory_space<smem>>, %arg3: memref<1x1x128xf32, #tpu.memory_space<vmem>>, %arg4: memref<1x1x1x128xf32, #tpu.memory_space<vmem>>) attributes {dimension_semantics = [#tpu.dimension_semantics<parallel>, #tpu.dimension_semantics<arbitrary>], iteration_bounds = array<i64: 8, 2>, scalar_prefetch = 1 : i64, scratch_operands = 0 : i64, tpu.core_type = #tpu.core_type<tc>, window_params = [{transform_indices = @transform_0, window_bounds = array<i64: 1, 1, 128>}, {transform_indices = @transform_1, window_bounds = array<i64: 1, 1, 1, 128>}]} {
    %c0 = arith.constant 0 : index
    %c0_0 = arith.constant 0 : index
    %c0_1 = arith.constant 0 : index
    %0 = vector.load %arg3[%c0, %c0_0, %c0_1] : memref<1x1x128xf32, #tpu.memory_space<vmem>>, vector<1x1x128xf32>
    %c0_2 = arith.constant 0 : index
    %c0_3 = arith.constant 0 : index
    %c0_4 = arith.constant 0 : index
    %c0_5 = arith.constant 0 : index
    %1 = vector.load %arg4[%c0_2, %c0_3, %c0_4, %c0_5] : memref<1x1x1x128xf32, #tpu.memory_space<vmem>>, vector<1x1x1x128xf32>
    %2 = vector.shape_cast %1 : vector<1x1x1x128xf32> to vector<1x1x128xf32>
    %3 = vector.shape_cast %0 : vector<1x1x128xf32> to vector<1x1x1x128xf32>
    tpu.vector_store %arg4[%c0_2, %c0_3, %c0_4, %c0_5], %3 {strides = array<i32>} : memref<1x1x1x128xf32, #tpu.memory_space<vmem>>, vector<1x1x1x128xf32>,
    return
  }
  func.func @transform_0(%arg0: i32, %arg1: i32, %arg2: memref<2x8xi32, #tpu.memory_space<smem>>) -> (i32, i32, i32) {
    %0 = arith.index_cast %arg1 : i32 to index
    %1 = arith.index_cast %arg0 : i32 to index
    %2 = memref.load %arg2[%0, %1] : memref<2x8xi32, #tpu.memory_space<smem>>
    %c0_i32 = arith.constant 0 : i32
    %c0_i32_0 = arith.constant 0 : i32
    %c0_i32_1 = arith.constant 0 : i32
    return %2, %c0_i32, %c0_i32_0 : i32, i32, i32
  }
  func.func @transform_1(%arg0: i32, %arg1: i32, %arg2: memref<2x8xi32, #tpu.memory_space<smem>>) -> (i32, i32, i32, i32) {
    %c0_i32 = arith.constant 0 : i32
    %c0_i32_0 = arith.constant 0 : i32
    %c0_i32_1 = arith.constant 0 : i32
    return %arg0, %arg1, %c0_i32, %c0_i32_0 : i32, i32, i32, i32
  }
}

</mosaic_0001>

<llo_original>
// kernel: tpu_custom_call.1
$region0: #{tpu_custom_call.1}
  #allocation0 [shape = 'u32[]', space=smem, size = 0x4, offset = 0x4, fixed_abs, tag = 'smem constant byte address 0x4 - core index']
  #allocation1 [shape = 'u32[144,128]{1,0:T(1,128)}', space=vmem, size = 0x12000, scoped, tag = 'internal scratch']
  #allocation2 [shape = 's32[1]{0}', space=sflag, size = 0x4, scoped, tag = 'scoped memory for tpu_custom_call.1']
  #allocation3 [shape = 'u8[1024]{0}', space=smem, size = 0x400, scoped, tag = 'prefetched SMEM operand 0']
  %s0 = inlined_call_operand.hbm [shape: s32[2,8], index: 0, kind: input, shape index: {}]
  %s1 = inlined_call_operand.hbm [shape: f32[32,1,128], index: 1, kind: input, shape index: {}]
  %s2 = inlined_call_operand.hbm [shape: f32[8,2,1,128], index: 2, kind: output, shape index: {}]
  %s3 = sld [smem:[#allocation0]]
  $region41: #{tpu_custom_call.1} parent=0
    _
  %s5 = ssub.s32 1, %s3
  %s6 = scalar_select 0, %s5, %s3
  %8 = dma.hbm_to_smem %s0, 32, [#allocation3], [#allocation2]
  %9 = dma.done [#allocation2], 32
  %10 = sfence
  $region1: #{tpu_custom_call.1} parent=0
    #allocation4 [shape = 'u8[1024]{0}', space=vmem, size = 0x400, scoped, tag = 'input window, operand 1']
    #allocation5 [shape = 's32[2]{0}', space=sflag, size = 0x8, scoped, tag = 'scoped memory for tpu_custom_call.1']
    #allocation6 [shape = 's32[2]{0}', space=sflag, size = 0x8, scoped, tag = 'scoped memory for tpu_custom_call.1']
    #allocation7 [shape = 'u8[1024]{0}', space=vmem, size = 0x400, scoped, tag = 'output window, operand 0']
    %11 = vsyncpa [#allocation5], 0
    %s12 = scalar_lea.sflag [#allocation5], 1
    %13 = vsyncpa %s12, 0
    %14 = vsyncpa [#allocation6], 0
    %s15 = scalar_lea.sflag [#allocation6], 1
    %16 = vsyncpa %s15, 0
    loop: start=0, step=1, limit=18
    $region2: #{tpu_custom_call.1} parent=1 // loop_pre_header
      _
    $region3: #{tpu_custom_call.1} parent=1 // loop_header
      %s18 = sphi 0, %s22
      %p19 = scmp.ge.s32.totalorder %s18, 18
      %s25 = sphi 0, %s37
      %s26 = sphi 0, %s33
      %s27 = sphi 0, %s25
      %s28 = sphi 0, %s26
      %s29 = sphi 0, %s27
      %s30 = sphi 0, %s28
      %s56 = sphi 0, %s58
      %s59 = sphi 0, %s56
      %s60 = sphi 0, %s59
      %s76 = sphi 0, %s60
      %s84 = sphi 0, %s86
      %s87 = sphi 0, %s84
      %s88 = sphi 0, %s87
      %s104 = sphi 0, %s88
    $region4: #{tpu_custom_call.1} parent=1 // loop_header_branch
      %21 = sbr.rel (%p19) target = $region8
    $region5: #{tpu_custom_call.1} parent=1 // loop_body
      %s23 = ssub.s32 %s18, 1
      %s24 = ssub.s32 %s18, 2
      %s31 = sadd.s32 1, %s26
      %p32 = scmp.ge.s32.totalorder %s31, 2
      %s33 = scalar_select %p32, 0, %s31
      %s34 = sadd.s32 1, %s25
      %s35 = scalar_select %p32, %s34, %s25
      %p36 = scmp.ge.s32.totalorder %s35, 8
      %s37 = scalar_select %p36, 0, %s35
      %s38 = sshra.s32 %s25, 7
      %s39 = sand.u32 %s25, 127
      %s40 = sadd.s32 %s38, %s26
      %s41 = smul.u32 %s40, 128
      %s42 = sshra.s32 %s25, 7
      %s43 = sand.u32 %s25, 127
      %s44 = sadd.s32 %s41, %s43
      %s45 = sld [smem:[#allocation3 + %s44]]
      %s46 = sshra.s32 %s37, 7
      %s47 = sand.u32 %s37, 127
      %s48 = sadd.s32 %s46, %s33
      %s49 = smul.u32 %s48, 128
      %s50 = sshra.s32 %s37, 7
      %s51 = sand.u32 %s37, 127
      %s52 = sadd.s32 %s49, %s51
      %s53 = sld [smem:[#allocation3 + %s52]]
      %s54 = ssub.s32 %s45, %s53
      %p55 = scmp.eq.s32.totalorder %s54, 0
      %s57 = sadd.s32 %s56, 1
      %s58 = scalar_select %p55, %s56, %s57
      %p61 = pneg %p55
      %p62 = scmp.eq.s32.totalorder %s18, 15
      %p63 = por %p61, %p62
      %p64 = scmp.ne.s32.totalorder %s56, %s59
      %p65 = scmp.eq.s32.totalorder %s18, 0
      %p66 = por %p64, %p65
      %p67 = scmp.ne.s32.totalorder %s56, %s59
      %p68 = scmp.eq.s32.totalorder %s23, 15
      %p69 = por %p67, %p68
      %p70 = scmp.ne.s32.totalorder %s59, %s60
      %p71 = scmp.eq.s32.totalorder %s23, 0
      %p72 = por %p70, %p71
      %p73 = scmp.ne.s32.totalorder %s59, %s60
      %p74 = scmp.eq.s32.totalorder %s24, 15
      %p75 = por %p73, %p74
      %p77 = scmp.ne.s32.totalorder %s60, %s76
      %p78 = scmp.eq.s32.totalorder %s24, 0
      %p79 = por %p77, %p78
      %s80 = ssub.s32 %s25, %s37
      %s81 = ssub.s32 %s26, %s33
      %s82 = sor.u32 %s80, %s81
      %p83 = scmp.eq.s32.totalorder %s82, 0
      %s85 = sadd.s32 %s84, 1
      %s86 = scalar_select %p83, %s84, %s85
      %p89 = pneg %p83
      %p90 = scmp.eq.s32.totalorder %s18, 15
      %p91 = por %p89, %p90
      %p92 = scmp.ne.s32.totalorder %s84, %s87
      %p93 = scmp.eq.s32.totalorder %s18, 0
      %p94 = por %p92, %p93
      %p95 = scmp.ne.s32.totalorder %s84, %s87
      %p96 = scmp.eq.s32.totalorder %s23, 15
      %p97 = por %p95, %p96
      %p98 = scmp.ne.s32.totalorder %s87, %s88
      %p99 = scmp.eq.s32.totalorder %s23, 0
      %p100 = por %p98, %p99
      %p101 = scmp.ne.s32.totalorder %s87, %s88
      %p102 = scmp.eq.s32.totalorder %s24, 15
      %p103 = por %p101, %p102
      %p105 = scmp.ne.s32.totalorder %s88, %s104
      %p106 = scmp.eq.s32.totalorder %s24, 0
      %p107 = por %p105, %p106
      %p108 = scmp.le.s32.totalorder 1, %s18
      %p109 = scmp.lt.s32.totalorder %s18, 17
      %p110 = pnand %p108, %p109
      %p111 = pneg %p110
      // Predicated region
      $region9: #{tpu_custom_call.1} parent=5 // pred_check
        _
      $region10: #{tpu_custom_call.1} parent=5 // pred_check_branch
        %113 = sbr.rel (%p110) target = $region12
      $region11: #{tpu_custom_call.1} parent=5 // pred_region
        %s114 = ssub.s32 %s18, 1
      $region12: #{tpu_custom_call.1} parent=5 // pred_fallthru
        _
      %p115 = scmp.lt.s32.totalorder %s18, 16
      // Predicated region
      $region13: #{tpu_custom_call.1} parent=5 // pred_check
        %p116 = pneg %p115
      $region14: #{tpu_custom_call.1} parent=5 // pred_check_branch
        %118 = sbr.rel (%p116) target = $region16
      $region15: #{tpu_custom_call.1} parent=5 // pred_region
        // Predicated region
        $region17: #{tpu_custom_call.1} parent=15 // pred_check
          %p119 = pneg %p66
        $region18: #{tpu_custom_call.1} parent=15 // pred_check_branch
          %121 = sbr.rel (%p119) target = $region20
        $region19: #{tpu_custom_call.1} parent=15 // pred_region
          %s122 = sand.u32 %s56, 1
          %s123 = scalar_lea.sflag [#allocation5], %s122
          %s124 = sand.u32 %s56, 1
          %s125 = scalar_lea.vmem [#allocation4], %s124
          %s126 = sshra.s32 %s25, 7
          %s127 = sand.u32 %s25, 127
          %s128 = sadd.s32 %s126, %s26
          %s129 = smul.u32 %s128, 128
          %s130 = sshra.s32 %s25, 7
          %s131 = sand.u32 %s25, 127
          %s132 = sadd.s32 %s129, %s131
          %s133 = sld [smem:[#allocation3 + %s132]]
          %s135 = ssub.s32 16, 16
          %136 = vsyncadd %s123, %s135
          %s137 = smul.addr %s133, 16
          %s138 = scalar_lea.hbm %s1, %s137
          %s140 = sshll.u32 %s125, 4
          %s141 = int_to_ptr.vmem [resolvable:$true] %s140
          %143 = dma.hbm_to_vmem [thread:$0]  %s138, 16, %s141, %s123
        $region20: #{tpu_custom_call.1} parent=15 // pred_fallthru
          _
      $region16: #{tpu_custom_call.1} parent=5 // pred_fallthru
        _
      %p144 = scmp.le.s32.totalorder 1, %s18
      %p145 = scmp.lt.s32.totalorder %s18, 17
      %p146 = pnand %p144, %p145
      %p147 = pneg %p146
      // Predicated region
      $region21: #{tpu_custom_call.1} parent=5 // pred_check
        _
      $region22: #{tpu_custom_call.1} parent=5 // pred_check_branch
        %149 = sbr.rel (%p146) target = $region24
      $region23: #{tpu_custom_call.1} parent=5 // pred_region
        %s150 = ssub.s32 %s18, 1
        %s151 = sand.u32 %s59, 1
        %s152 = scalar_lea.sflag [#allocation5], %s151
        %s153 = sand.u32 %s59, 1
        %s154 = scalar_lea.vmem [#allocation4], %s153
        // Predicated region
        $region25: #{tpu_custom_call.1} parent=23 // pred_check
          %p155 = pneg %p72
        $region26: #{tpu_custom_call.1} parent=23 // pred_check_branch
          %157 = sbr.rel (%p155) target = $region28
        $region27: #{tpu_custom_call.1} parent=23 // pred_region
          %158 = dma.done %s152, 16
        $region28: #{tpu_custom_call.1} parent=23 // pred_fallthru
          _
        %s159 = sand.u32 %s59, 1
        %s160 = scalar_lea.sflag [#allocation5], %s159
        %s161 = sand.u32 %s59, 1
        %s162 = scalar_lea.vmem [#allocation4], %s161
        %p163 = pneg %p72
        %p164 = pneg %p69
        %p165 = pneg %p100
        %p166 = pneg %p97
        %s167 = sand.u32 %s87, 1
        %s168 = scalar_lea.sflag [#allocation6], %s167
        %s169 = sand.u32 %s87, 1
        %s170 = scalar_lea.vmem [#allocation7], %s169
        %s171 = sshra.s32 %s27, 7
        %s172 = sand.u32 %s27, 127
        %s173 = sadd.s32 %s171, %s28
        %s174 = smul.u32 %s173, 128
        %s175 = sshra.s32 %s27, 7
        %s176 = sand.u32 %s27, 127
        %s177 = sadd.s32 %s174, %s176
        %s178 = sld [smem:[#allocation3 + %s177]]
        %v179 = vld [vmem:[%s154] sm:$0x1]
        %180 = vst [vmem:[%s170] sm:$0x1] %v179
        %s181 = sand.u32 %s87, 1
        %s182 = scalar_lea.sflag [#allocation6], %s181
        %s183 = sand.u32 %s87, 1
        %s184 = scalar_lea.vmem [#allocation7], %s183
        // Predicated region
        $region29: #{tpu_custom_call.1} parent=23 // pred_check
          %p185 = pneg %p97
        $region30: #{tpu_custom_call.1} parent=23 // pred_check_branch
          %187 = sbr.rel (%p185) target = $region32
        $region31: #{tpu_custom_call.1} parent=23 // pred_region
          %s189 = ssub.s32 16, 16
          %190 = vsyncadd %s182, %s189
          %s191 = smul.addr %s27, 2
          %s192 = sadd.s32 %s28, %s191
          %s193 = smul.addr %s192, 16
          %s194 = scalar_lea.hbm %s2, %s193
          %s196 = sshll.u32 %s184, 4
          %s197 = int_to_ptr.vmem [resolvable:$true] %s196
          %199 = dma.vmem_to_hbm [thread:$0]  %s197, 16, %s194, %s182
        $region32: #{tpu_custom_call.1} parent=23 // pred_fallthru
          _
      $region24: #{tpu_custom_call.1} parent=5 // pred_fallthru
        _
      %p200 = scmp.le.s32.totalorder 2, %s18
      // Predicated region
      $region33: #{tpu_custom_call.1} parent=5 // pred_check
        %p201 = pneg %p200
      $region34: #{tpu_custom_call.1} parent=5 // pred_check_branch
        %203 = sbr.rel (%p201) target = $region36
      $region35: #{tpu_custom_call.1} parent=5 // pred_region
        %s204 = ssub.s32 %s18, 2
        // Predicated region
        $region37: #{tpu_custom_call.1} parent=35 // pred_check
          %p205 = pneg %p103
        $region38: #{tpu_custom_call.1} parent=35 // pred_check_branch
          %207 = sbr.rel (%p205) target = $region40
        $region39: #{tpu_custom_call.1} parent=35 // pred_region
          %s208 = sand.u32 %s88, 1
          %s209 = scalar_lea.sflag [#allocation6], %s208
          %s210 = sand.u32 %s88, 1
          %s211 = scalar_lea.vmem [#allocation7], %s210
          %212 = dma.done %s209, 16
        $region40: #{tpu_custom_call.1} parent=35 // pred_fallthru
          _
      $region36: #{tpu_custom_call.1} parent=5 // pred_fallthru
        _
    $region6: #{tpu_custom_call.1} parent=1 // loop_footer
      %s22 = sadd.s32 1, %s18
    $region7: #{tpu_custom_call.1} parent=1 // loop_footer_branch
      %17 = sbr.rel target = $region3
    $region8: #{tpu_custom_call.1} parent=1 // loop_exit
      _
    %213 = vsyncpa [#allocation5], 1
    %s214 = scalar_lea.sflag [#allocation5], 1
    %215 = vsyncpa %s214, 1
    %216 = vsyncpa [#allocation6], 1
    %s217 = scalar_lea.sflag [#allocation6], 1
    %218 = vsyncpa %s217, 1

</llo_original>
